<compile_context>
chip_gen: v7x
topology: tpu7x:2x2x1
jax: 0.10.0
libtpu: 0.0.40
codegen_flags: <defaults>
</compile_context>

<pallas_src>
import functools

import jax
import jax.numpy as jnp
import numpy as np
from jax import lax
from jax.experimental import pallas as pl
from jax.experimental.pallas import tpu as pltpu

_LANE = 128
_SUBLANE = 8


def _round_up(v, m):
    return ((v + m - 1) // m) * m


# ------------------------------ Pallas kernel --------------------------------

def _tv_partial_kernel(x_ref, h_out_ref, w_out_ref, *,
                       nc, h, tb, th, img_masked, row_masked):
    """Partial sums of squared H-/W-direction differences for one block.

    x_ref     : (tb, th, W) input block, native dtype
    h_out_ref : (1, 1, 8, 128) f32 tile for this block's vertical partial
    w_out_ref : (1, 1, 8, 128) f32 tile for this block's horizontal partial
    """
    # Cast after the DMA: HBM->VMEM traffic stays in the native dtype.
    x = x_ref[...].astype(jnp.float32)

    dh = x[:, 1:, :] - x[:, :-1, :]          # (tb, th-1, W) vertical diffs
    dw = x[:, :, 1:] - x[:, :, :-1]          # (tb, th, W-1) horizontal diffs

    # Ragged tail blocks read unspecified data past the array edge; mask it.
    if img_masked:
        base = pl.program_id(0) * tb
        gi = lax.broadcasted_iota(jnp.int32, dh.shape, 0) + base
        dh = jnp.where(gi < nc, dh, 0.0)
        gi = lax.broadcasted_iota(jnp.int32, dw.shape, 0) + base
        dw = jnp.where(gi < nc, dw, 0.0)
    if row_masked:
        base = pl.program_id(1) * th
        gr = lax.broadcasted_iota(jnp.int32, dh.shape, 1) + base
        dh = jnp.where(gr < h - 1, dh, 0.0)   # pair (g, g+1) needs g+1 <= H-1
        gr = lax.broadcasted_iota(jnp.int32, dw.shape, 1) + base
        dw = jnp.where(gr < h, dw, 0.0)       # row g must be a real row

    hpart = jnp.sum(dh * dh)
    wpart = jnp.sum(dw * dw)
    # Full, aligned (8,128) tile stores; the epilogue reads element [.., 0, 0].
    h_out_ref[...] = jnp.full(h_out_ref.shape, hpart, jnp.float32)
    w_out_ref[...] = jnp.full(w_out_ref.shape, wpart, jnp.float32)


# -------------------------------- wrapper -------------------------------------

def _choose_tiling(nc, h, w, block_elems):
    """Pick (tb, th) so one block is ~block_elems *padded* f32 elements in VMEM."""
    per_image = _round_up(h, _SUBLANE) * _round_up(w, _LANE)
    if per_image <= block_elems:
        tb = max(1, min(nc, block_elems // per_image))
        th = h                                    # full spatial extent per block
    else:
        tb = 1                                    # large image: tile H instead
        th = max(_SUBLANE,
                 ((block_elems // _round_up(w, _LANE)) // _SUBLANE) * _SUBLANE)
        th = min(th, h)
    return tb, th


def tv_loss(x_nchw, weight=1.0, block_elems=1 << 20):
    """Matches TVLoss.forward(x): weight*2*(h_tv/count_h + w_tv/count_w)/batch."""
    n, c, h, w = x_nchw.shape
    assert h >= 2 and w >= 2, "TV loss needs at least 2 pixels per spatial dim"
    nc = n * c
    # Native dtype all the way into the kernel (no wrapper-side cast pass).
    x3 = x_nchw.reshape(nc, h, w)

    tb, th = _choose_tiling(nc, h, w, block_elems)
    nb = -(-nc // tb)
    nh = -(-h // th)
    img_masked = (nc % tb) != 0
    row_masked = (h % th) != 0

    kernel = functools.partial(
        _tv_partial_kernel, nc=nc, h=h, tb=tb, th=th,
        img_masked=img_masked, row_masked=row_masked)

    h_parts, w_parts = pl.pallas_call(
        kernel,
        out_shape=(jax.ShapeDtypeStruct((nb, nh, _SUBLANE, _LANE), jnp.float32),
                   jax.ShapeDtypeStruct((nb, nh, _SUBLANE, _LANE), jnp.float32)),
        grid=(nb, nh),
        in_specs=[pl.BlockSpec((tb, th, w), lambda i, j: (i, j, 0))],
        out_specs=(pl.BlockSpec((1, 1, _SUBLANE, _LANE), lambda i, j: (i, j, 0, 0)),
                   pl.BlockSpec((1, 1, _SUBLANE, _LANE), lambda i, j: (i, j, 0, 0))),
        compiler_params=pltpu.CompilerParams(
            # every block is independent -> both axes parallel (v7x megacore)
            dimension_semantics=("parallel", "parallel"),
            vmem_limit_bytes=48 * 1024 * 1024,
        ),
    )(x3)

    h_tv = jnp.sum(h_parts[:, :, 0, 0])
    w_tv = jnp.sum(w_parts[:, :, 0, 0])

    # Vertical pairs straddling two H-chunks are invisible to any single block;
    # add them exactly here (only a few rows per image, cheap pure JAX).
    if nh > 1:
        bidx = np.arange(th, h, th)
        if bidx.size:
            top = x3[:, bidx - 1, :].astype(jnp.float32)
            bot = x3[:, bidx, :].astype(jnp.float32)
            h_tv = h_tv + jnp.sum((bot - top) ** 2)

    count_h = c * (h - 1) * w
    count_w = c * h * (w - 1)
    return weight * 2.0 * (h_tv / count_h + w_tv / count_w) / n


# ------------------------------ pure-JAX reference -----------------------------

def tv_loss_ref(x, weight=1.0):
    n, c, h, w = x.shape
    xf = x.astype(jnp.float32)
    h_tv = jnp.sum((xf[:, :, 1:, :] - xf[:, :, :h - 1, :]) ** 2)
    w_tv = jnp.sum((xf[:, :, :, 1:] - xf[:, :, :, :w - 1]) ** 2)
    count_h = c * (h - 1) * w
    count_w = c * h * (w - 1)
    return weight * 2.0 * (h_tv / count_h + w_tv / count_w) / n


if __name__ == "__main__":
    key = jax.random.PRNGKey(0)
    k0, k1 = jax.random.split(key)

    # Primary check: NCHW shape implied by the module.
    x = jax.random.normal(k0, (2, 4, 16, 16), jnp.float32)
    loss = jax.block_until_ready(jax.jit(lambda a: tv_loss(a, weight=1.0))(x))
    ref = tv_loss_ref(x, weight=1.0)
    assert jnp.isfinite(loss), "loss is not finite"
    assert jnp.allclose(loss, ref, rtol=1e-5, atol=1e-6), (float(loss), float(ref))

    # Exercise the H-tiled path (row-chunk grid + boundary-row epilogue).
    x2 = jax.random.normal(k1, (2, 3, 32, 128), jnp.float32)
    loss2 = jax.block_until_ready(
        jax.jit(lambda a: tv_loss(a, weight=0.5, block_elems=8 * 128))(x2))
    ref2 = tv_loss_ref(x2, weight=0.5)
    assert jnp.allclose(loss2, ref2, rtol=1e-5, atol=1e-6), (float(loss2), float(ref2))

    # bf16 input: the f32 cast happens inside the kernel, not as an XLA pre-pass.
    xb = x.astype(jnp.bfloat16)
    loss_b = jax.block_until_ready(jax.jit(tv_loss)(xb))
    ref_b = tv_loss_ref(xb, weight=1.0)
    assert jnp.allclose(loss_b, ref_b, rtol=1e-2, atol=1e-3), (float(loss_b), float(ref_b))

    print("KERNEL_OK")
</pallas_src>

<mosaic_0001>
module attributes {stable_mosaic.version = 11 : i64} {
  func.func @_tv_partial_kernel(%arg0: i32, %arg1: i32, %arg2: memref<8x16x16xf32, #tpu.memory_space<vmem>>, %arg3: memref<1x1x8x128xf32, #tpu.memory_space<vmem>>, %arg4: memref<1x1x8x128xf32, #tpu.memory_space<vmem>>) attributes {dimension_semantics = [#tpu.dimension_semantics<parallel>, #tpu.dimension_semantics<parallel>], iteration_bounds = array<i64: 1, 1>, scalar_prefetch = 0 : i64, scratch_operands = 0 : i64, tpu.core_type = #tpu.core_type<tc>, window_params = [{transform_indices = @transform_0, window_bounds = array<i64: 8, 16, 16>}, {transform_indices = @transform_1, window_bounds = array<i64: 1, 1, 8, 128>}, {transform_indices = @transform_2, window_bounds = array<i64: 1, 1, 8, 128>}]} {
    %c0 = arith.constant 0 : index
    %c0_0 = arith.constant 0 : index
    %c0_1 = arith.constant 0 : index
    %0 = vector.load %arg2[%c0, %c0_0, %c0_1] : memref<8x16x16xf32, #tpu.memory_space<vmem>>, vector<8x16x16xf32>
    %1 = vector.extract_strided_slice %0 {offsets = [0, 1, 0], sizes = [8, 15, 16], strides = [1, 1, 1]} : vector<8x16x16xf32> to vector<8x15x16xf32>
    %2 = vector.extract_strided_slice %0 {offsets = [0, 0, 0], sizes = [8, 15, 16], strides = [1, 1, 1]} : vector<8x16x16xf32> to vector<8x15x16xf32>
    %3 = arith.subf %1, %2 : vector<8x15x16xf32>
    %4 = vector.extract_strided_slice %0 {offsets = [0, 0, 1], sizes = [8, 16, 15], strides = [1, 1, 1]} : vector<8x16x16xf32> to vector<8x16x15xf32>
    %5 = vector.extract_strided_slice %0 {offsets = [0, 0, 0], sizes = [8, 16, 15], strides = [1, 1, 1]} : vector<8x16x16xf32> to vector<8x16x15xf32>
    %6 = arith.subf %4, %5 : vector<8x16x15xf32>
    %7 = arith.mulf %3, %3 : vector<8x15x16xf32>
    %8 = vector.shape_cast %7 : vector<8x15x16xf32> to vector<1x8x15x16xf32>
    %cst = arith.constant dense<0.000000e+00> : vector<1xf32>
    %9 = vector.multi_reduction <add>, %8, %cst [1, 2, 3] : vector<1x8x15x16xf32> to vector<1xf32>
    %10 = vector.shape_cast %9 : vector<1xf32> to vector<1x1x1x1xf32>
    %11 = vector.extract %10[0, 0, 0, 0] : f32 from vector<1x1x1x1xf32>
    %12 = arith.mulf %6, %6 : vector<8x16x15xf32>
    %13 = vector.shape_cast %12 : vector<8x16x15xf32> to vector<1x8x16x15xf32>
    %cst_2 = arith.constant dense<0.000000e+00> : vector<1xf32>
    %14 = vector.multi_reduction <add>, %13, %cst_2 [1, 2, 3] : vector<1x8x16x15xf32> to vector<1xf32>
    %15 = vector.shape_cast %14 : vector<1xf32> to vector<1x1x1x1xf32>
    %16 = vector.extract %15[0, 0, 0, 0] : f32 from vector<1x1x1x1xf32>
    %17 = vector.broadcast %11 : f32 to vector<1x1x8x128xf32>
    %c0_3 = arith.constant 0 : index
    %c0_4 = arith.constant 0 : index
    %c0_5 = arith.constant 0 : index
    %c0_6 = arith.constant 0 : index
    %18 = vector.load %arg3[%c0_3, %c0_4, %c0_5, %c0_6] : memref<1x1x8x128xf32, #tpu.memory_space<vmem>>, vector<1x1x8x128xf32>
    tpu.vector_store %arg3[%c0_3, %c0_4, %c0_5, %c0_6], %17 {strides = array<i32>} : memref<1x1x8x128xf32, #tpu.memory_space<vmem>>, vector<1x1x8x128xf32>,
    %19 = vector.broadcast %16 : f32 to vector<1x1x8x128xf32>
    %c0_7 = arith.constant 0 : index
    %c0_8 = arith.constant 0 : index
    %c0_9 = arith.constant 0 : index
    %c0_10 = arith.constant 0 : index
    %20 = vector.load %arg4[%c0_7, %c0_8, %c0_9, %c0_10] : memref<1x1x8x128xf32, #tpu.memory_space<vmem>>, vector<1x1x8x128xf32>
    tpu.vector_store %arg4[%c0_7, %c0_8, %c0_9, %c0_10], %19 {strides = array<i32>} : memref<1x1x8x128xf32, #tpu.memory_space<vmem>>, vector<1x1x8x128xf32>,
    return
  }
  func.func @transform_0(%arg0: i32, %arg1: i32) -> (i32, i32, i32) {
    %c0_i32 = arith.constant 0 : i32
    %c0_i32_0 = arith.constant 0 : i32
    return %arg0, %arg1, %c0_i32 : i32, i32, i32
  }
  func.func @transform_1(%arg0: i32, %arg1: i32) -> (i32, i32, i32, i32) {
    %c0_i32 = arith.constant 0 : i32
    %c0_i32_0 = arith.constant 0 : i32
    %c0_i32_1 = arith.constant 0 : i32
    return %arg0, %arg1, %c0_i32, %c0_i32_0 : i32, i32, i32, i32
  }
  func.func @transform_2(%arg0: i32, %arg1: i32) -> (i32, i32, i32, i32) {
    %c0_i32 = arith.constant 0 : i32
    %c0_i32_0 = arith.constant 0 : i32
    %c0_i32_1 = arith.constant 0 : i32
    return %arg0, %arg1, %c0_i32, %c0_i32_0 : i32, i32, i32, i32
  }
}

</mosaic_0001>

<llo_original>
// kernel: _lambda_.1
$region0: #{_lambda_.1}
  #allocation0 [shape = 'u32[]', space=smem, size = 0x4, offset = 0x4, fixed_abs, tag = 'smem constant byte address 0x4 - core index']
  #allocation1 [shape = 'u32[144,128]{1,0:T(1,128)}', space=vmem, size = 0x12000, scoped, tag = 'internal scratch']
  %s0 = inlined_call_operand.hbm [shape: f32[8,16,16], index: 0, kind: input, shape index: {}]
  %s1 = inlined_call_operand.vmem [shape: f32[1,1,8,128], index: 1, kind: output, shape index: {0}]
  %s2 = inlined_call_operand.vmem [shape: f32[1,1,8,128], index: 2, kind: output, shape index: {1}]
  %3 = xla_tuple %s1, %s2
  %s4 = sld [smem:[#allocation0]]
  $region26: #{_lambda_.1} parent=0
    _
  %s6 = ssub.s32 1, %s4
  %s7 = scalar_select 0, %s6, %s4
  $region1: #{_lambda_.1} parent=0
    #allocation2 [shape = 'u8[65536]{0}', space=vmem, size = 0x10000, scoped, tag = 'input window, operand 0, single buffered']
    #allocation3 [shape = 's32[1]{0}', space=sflag, size = 0x4, scoped, tag = 'scoped memory for _lambda_.1']
    %8 = vsyncpa [#allocation3], 0
    // Predicated region
    $region2: #{_lambda_.1} parent=1 // pred_check
      _
    $region3: #{_lambda_.1} parent=1 // pred_check_branch
      %10 = sbr.rel (0) target = $region5
    $region4: #{_lambda_.1} parent=1 // pred_region
      %s12 = ssub.s32 2048, 2048
      %13 = vsyncadd [#allocation3], %s12
      %s14 = sshll.u32 [#allocation2], 4
      %s15 = int_to_ptr.vmem [resolvable:$true] %s14
      %20 = dma.hbm_to_vmem [thread:$0]  %s0, 2048, %s15, [#allocation3], 128, 128, 8
    $region5: #{_lambda_.1} parent=1 // pred_fallthru
      _
    // Predicated region
    $region6: #{_lambda_.1} parent=1 // pred_check
      _
    $region7: #{_lambda_.1} parent=1 // pred_check_branch
      %22 = sbr.rel (0) target = $region9
    $region8: #{_lambda_.1} parent=1 // pred_region
      %23 = dma.done [#allocation3], 2048
    $region9: #{_lambda_.1} parent=1 // pred_fallthru
      _
    %v24 = vld [vmem:[#allocation2] sm:$0xff]
    %v25 = vld [vmem:[#allocation2 + $0x8] sm:$0xff]
    %v26 = vld [vmem:[#allocation2 + $0x10] sm:$0xff]
    %v27 = vld [vmem:[#allocation2 + $0x18] sm:$0xff]
    %v28 = vld [vmem:[#allocation2 + $0x20] sm:$0xff]
    %v29 = vld [vmem:[#allocation2 + $0x28] sm:$0xff]
    %v30 = vld [vmem:[#allocation2 + $0x30] sm:$0xff]
    %v31 = vld [vmem:[#allocation2 + $0x38] sm:$0xff]
    %v32 = vld [vmem:[#allocation2 + $0x40] sm:$0xff]
    %v33 = vld [vmem:[#allocation2 + $0x48] sm:$0xff]
    %v34 = vld [vmem:[#allocation2 + $0x50] sm:$0xff]
    %v35 = vld [vmem:[#allocation2 + $0x58] sm:$0xff]
    %v36 = vld [vmem:[#allocation2 + $0x60] sm:$0xff]
    %v37 = vld [vmem:[#allocation2 + $0x68] sm:$0xff]
    %v38 = vld [vmem:[#allocation2 + $0x70] sm:$0xff]
    %v39 = vld [vmem:[#allocation2 + $0x78] sm:$0xff]
    %vm56 = vcmask 1040384
    %v57 = vrot.slane %v24, 7
    %v58 = vrot.slane %v25, 7
    %v59 = vsel %vm56, %v57, %v58
    %v60 = vrot.slane %v26, 7
    %v61 = vrot.slane %v27, 7
    %v62 = vsel %vm56, %v60, %v61
    %v63 = vrot.slane %v28, 7
    %v64 = vrot.slane %v29, 7
    %v65 = vsel %vm56, %v63, %v64
    %v66 = vrot.slane %v30, 7
    %v67 = vrot.slane %v31, 7
    %v68 = vsel %vm56, %v66, %v67
    %v69 = vrot.slane %v32, 7
    %v70 = vrot.slane %v33, 7
    %v71 = vsel %vm56, %v69, %v70
    %v72 = vrot.slane %v34, 7
    %v73 = vrot.slane %v35, 7
    %v74 = vsel %vm56, %v72, %v73
    %v75 = vrot.slane %v36, 7
    %v76 = vrot.slane %v37, 7
    %v77 = vsel %vm56, %v75, %v76
    %v78 = vrot.slane %v38, 7
    %v79 = vrot.slane %v39, 7
    %v80 = vsel %vm56, %v78, %v79
    %v97 = vsub.f32 %v24, %v57
    %v98 = vsub.f32 %v25, %v59
    %v99 = vsub.f32 %v26, %v60
    %v100 = vsub.f32 %v27, %v62
    %v101 = vsub.f32 %v28, %v63
    %v102 = vsub.f32 %v29, %v65
    %v103 = vsub.f32 %v30, %v66
    %v104 = vsub.f32 %v31, %v68
    %v105 = vsub.f32 %v32, %v69
    %v106 = vsub.f32 %v33, %v71
    %v107 = vsub.f32 %v34, %v72
    %v108 = vsub.f32 %v35, %v74
    %v109 = vsub.f32 %v36, %v75
    %v110 = vsub.f32 %v37, %v77
    %v111 = vsub.f32 %v38, %v78
    %v112 = vsub.f32 %v39, %v80
    %113 = vrot.lane.b32.xlu0 %v24, 1
    %v114 = vpop.permute.xlu0 %113
    %115 = vrot.lane.b32.xlu0 %v25, 1
    %v116 = vpop.permute.xlu0 %115
    %117 = vrot.lane.b32.xlu0 %v26, 1
    %v118 = vpop.permute.xlu0 %117
    %119 = vrot.lane.b32.xlu0 %v27, 1
    %v120 = vpop.permute.xlu0 %119
    %121 = vrot.lane.b32.xlu0 %v28, 1
    %v122 = vpop.permute.xlu0 %121
    %123 = vrot.lane.b32.xlu0 %v29, 1
    %v124 = vpop.permute.xlu0 %123
    %125 = vrot.lane.b32.xlu0 %v30, 1
    %v126 = vpop.permute.xlu0 %125
    %127 = vrot.lane.b32.xlu0 %v31, 1
    %v128 = vpop.permute.xlu0 %127
    %129 = vrot.lane.b32.xlu0 %v32, 1
    %v130 = vpop.permute.xlu0 %129
    %131 = vrot.lane.b32.xlu0 %v33, 1
    %v132 = vpop.permute.xlu0 %131
    %133 = vrot.lane.b32.xlu0 %v34, 1
    %v134 = vpop.permute.xlu0 %133
    %135 = vrot.lane.b32.xlu0 %v35, 1
    %v136 = vpop.permute.xlu0 %135
    %137 = vrot.lane.b32.xlu0 %v36, 1
    %v138 = vpop.permute.xlu0 %137
    %139 = vrot.lane.b32.xlu0 %v37, 1
    %v140 = vpop.permute.xlu0 %139
    %141 = vrot.lane.b32.xlu0 %v38, 1
    %v142 = vpop.permute.xlu0 %141
    %143 = vrot.lane.b32.xlu0 %v39, 1
    %v144 = vpop.permute.xlu0 %143
    %v161 = vsub.f32 %v24, %v114
    %v162 = vsub.f32 %v25, %v116
    %v163 = vsub.f32 %v26, %v118
    %v164 = vsub.f32 %v27, %v120
    %v165 = vsub.f32 %v28, %v122
    %v166 = vsub.f32 %v29, %v124
    %v167 = vsub.f32 %v30, %v126
    %v168 = vsub.f32 %v31, %v128
    %v169 = vsub.f32 %v32, %v130
    %v170 = vsub.f32 %v33, %v132
    %v171 = vsub.f32 %v34, %v134
    %v172 = vsub.f32 %v35, %v136
    %v173 = vsub.f32 %v36, %v138
    %v174 = vsub.f32 %v37, %v140
    %v175 = vsub.f32 %v38, %v142
    %v176 = vsub.f32 %v39, %v144
    %v177 = vmul.f32 %v97, %v97
    %v178 = vmul.f32 %v98, %v98
    %v179 = vmul.f32 %v99, %v99
    %v180 = vmul.f32 %v100, %v100
    %v181 = vmul.f32 %v101, %v101
    %v182 = vmul.f32 %v102, %v102
    %v183 = vmul.f32 %v103, %v103
    %v184 = vmul.f32 %v104, %v104
    %v185 = vmul.f32 %v105, %v105
    %v186 = vmul.f32 %v106, %v106
    %v187 = vmul.f32 %v107, %v107
    %v188 = vmul.f32 %v108, %v108
    %v189 = vmul.f32 %v109, %v109
    %v190 = vmul.f32 %v110, %v110
    %v191 = vmul.f32 %v111, %v111
    %v192 = vmul.f32 %v112, %v112
    %vm209 = vcmask 1046528
    %v210 = vrot.slane %v177, 1
    %v211 = vrot.slane %v178, 1
    %v212 = vsel %vm209, %v210, %v211
    %v213 = vrot.slane %v179, 1
    %v214 = vrot.slane %v180, 1
    %v215 = vsel %vm209, %v213, %v214
    %v216 = vrot.slane %v181, 1
    %v217 = vrot.slane %v182, 1
    %v218 = vsel %vm209, %v216, %v217
    %v219 = vrot.slane %v183, 1
    %v220 = vrot.slane %v184, 1
    %v221 = vsel %vm209, %v219, %v220
    %v222 = vrot.slane %v185, 1
    %v223 = vrot.slane %v186, 1
    %v224 = vsel %vm209, %v222, %v223
    %v225 = vrot.slane %v187, 1
    %v226 = vrot.slane %v188, 1
    %v227 = vsel %vm209, %v225, %v226
    %v228 = vrot.slane %v189, 1
    %v229 = vrot.slane %v190, 1
    %v230 = vsel %vm209, %v228, %v229
    %v231 = vrot.slane %v191, 1
    %v232 = vrot.slane %v192, 1
    %v233 = vsel %vm209, %v231, %v232
    %vm250 = vcmask 130048
    %v251 = vsel %vm250, %v212, 0.0
    %vm252 = vcmask 129024
    %v253 = vsel %vm252, %v211, 0.0
    %v254 = vadd.f32 %v251, %v253
    %v255 = vsel %vm250, %v215, 0.0
    %v256 = vadd.f32 %v254, %v255
    %v257 = vsel %vm252, %v214, 0.0
    %v258 = vadd.f32 %v256, %v257
    %v259 = vsel %vm250, %v218, 0.0
    %v260 = vadd.f32 %v258, %v259
    %v261 = vsel %vm252, %v217, 0.0
    %v262 = vadd.f32 %v260, %v261
    %v263 = vsel %vm250, %v221, 0.0
    %v264 = vadd.f32 %v262, %v263
    %v265 = vsel %vm252, %v220, 0.0
    %v266 = vadd.f32 %v264, %v265
    %v267 = vsel %vm250, %v224, 0.0
    %v268 = vadd.f32 %v266, %v267
    %v269 = vsel %vm252, %v223, 0.0
    %v270 = vadd.f32 %v268, %v269
    %v271 = vsel %vm250, %v227, 0.0
    %v272 = vadd.f32 %v270, %v271
    %v273 = vsel %vm252, %v226, 0.0
    %v274 = vadd.f32 %v272, %v273
    %v275 = vsel %vm250, %v230, 0.0
    %v276 = vadd.f32 %v274, %v275
    %v277 = vsel %vm252, %v229, 0.0
    %v278 = vadd.f32 %v276, %v277
    %v279 = vsel %vm250, %v233, 0.0
    %v280 = vadd.f32 %v278, %v279
    %v281 = vsel %vm252, %v232, 0.0
    %v282 = vadd.f32 %v280, %v281
    %283 = vadd.xlane.f32.xlu0 %v282
    %v284 = vpop.xlane.xlu0 %283
    %v285 = vrot.slane %v284, 4
    %v286 = vadd.f32 %v284, %v285
    %v287 = vrot.slane %v286, 2
    %v288 = vadd.f32 %v286, %v287
    %v289 = vrot.slane %v288, 1
    %v290 = vadd.f32 %v288, %v289
    %s291 = vtos %v290
    %v292 = vmul.f32 %v161, %v161
    %v293 = vmul.f32 %v162, %v162
    %v294 = vmul.f32 %v163, %v163
    %v295 = vmul.f32 %v164, %v164
    %v296 = vmul.f32 %v165, %v165
    %v297 = vmul.f32 %v166, %v166
    %v298 = vmul.f32 %v167, %v167
    %v299 = vmul.f32 %v168, %v168
    %v300 = vmul.f32 %v169, %v169
    %v301 = vmul.f32 %v170, %v170
    %v302 = vmul.f32 %v171, %v171
    %v303 = vmul.f32 %v172, %v172
    %v304 = vmul.f32 %v173, %v173
    %v305 = vmul.f32 %v174, %v174
    %v306 = vmul.f32 %v175, %v175
    %v307 = vmul.f32 %v176, %v176
    %324 = vrot.lane.b32.xlu0 %v292, 127
    %v325 = vpop.permute.xlu0 %324
    %326 = vrot.lane.b32.xlu0 %v293, 127
    %v327 = vpop.permute.xlu0 %326
    %328 = vrot.lane.b32.xlu0 %v294, 127
    %v329 = vpop.permute.xlu0 %328
    %330 = vrot.lane.b32.xlu0 %v295, 127
    %v331 = vpop.permute.xlu0 %330
    %332 = vrot.lane.b32.xlu0 %v296, 127
    %v333 = vpop.permute.xlu0 %332
    %334 = vrot.lane.b32.xlu0 %v297, 127
    %v335 = vpop.permute.xlu0 %334
    %336 = vrot.lane.b32.xlu0 %v298, 127
    %v337 = vpop.permute.xlu0 %336
    %338 = vrot.lane.b32.xlu0 %v299, 127
    %v339 = vpop.permute.xlu0 %338
    %340 = vrot.lane.b32.xlu0 %v300, 127
    %v341 = vpop.permute.xlu0 %340
    %342 = vrot.lane.b32.xlu0 %v301, 127
    %v343 = vpop.permute.xlu0 %342
    %344 = vrot.lane.b32.xlu0 %v302, 127
    %v345 = vpop.permute.xlu0 %344
    %346 = vrot.lane.b32.xlu0 %v303, 127
    %v347 = vpop.permute.xlu0 %346
    %348 = vrot.lane.b32.xlu0 %v304, 127
    %v349 = vpop.permute.xlu0 %348
    %350 = vrot.lane.b32.xlu0 %v305, 127
    %v351 = vpop.permute.xlu0 %350
    %352 = vrot.lane.b32.xlu0 %v306, 127
    %v353 = vpop.permute.xlu0 %352
    %354 = vrot.lane.b32.xlu0 %v307, 127
    %v355 = vpop.permute.xlu0 %354
    %vm372 = vcmask 121856
    %v373 = vsel %vm372, %v325, 0.0
    %v374 = vsel %vm372, %v327, 0.0
    %v375 = vadd.f32 %v373, %v374
    %v376 = vsel %vm372, %v329, 0.0
    %v377 = vadd.f32 %v375, %v376
    %v378 = vsel %vm372, %v331, 0.0
    %v379 = vadd.f32 %v377, %v378
    %v380 = vsel %vm372, %v333, 0.0
    %v381 = vadd.f32 %v379, %v380
    %v382 = vsel %vm372, %v335, 0.0
    %v383 = vadd.f32 %v381, %v382
    %v384 = vsel %vm372, %v337, 0.0
    %v385 = vadd.f32 %v383, %v384
    %v386 = vsel %vm372, %v339, 0.0
    %v387 = vadd.f32 %v385, %v386
    %v388 = vsel %vm372, %v341, 0.0
    %v389 = vadd.f32 %v387, %v388
    %v390 = vsel %vm372, %v343, 0.0
    %v391 = vadd.f32 %v389, %v390
    %v392 = vsel %vm372, %v345, 0.0
    %v393 = vadd.f32 %v391, %v392
    %v394 = vsel %vm372, %v347, 0.0
    %v395 = vadd.f32 %v393, %v394
    %v396 = vsel %vm372, %v349, 0.0
    %v397 = vadd.f32 %v395, %v396
    %v398 = vsel %vm372, %v351, 0.0
    %v399 = vadd.f32 %v397, %v398
    %v400 = vsel %vm372, %v353, 0.0
    %v401 = vadd.f32 %v399, %v400
    %v402 = vsel %vm372, %v355, 0.0
    %v403 = vadd.f32 %v401, %v402
    %404 = vadd.xlane.f32.xlu0 %v403
    %v405 = vpop.xlane.xlu0 %404
    %v406 = vrot.slane %v405, 4
    %v407 = vadd.f32 %v405, %v406
    %v408 = vrot.slane %v407, 2
    %v409 = vadd.f32 %v407, %v408
    %v410 = vrot.slane %v409, 1
    %v411 = vadd.f32 %v409, %v410
    %s412 = vtos %v411
    %v413 = vstv %s291
    %414 = vst [vmem:[%s1] sm:$0xff] %v413
    %v415 = vstv %s412
    %416 = vst [vmem:[%s2] sm:$0xff] %v415
    // Predicated region
    $region10: #{_lambda_.1} parent=1 // pred_check
      _
    $region11: #{_lambda_.1} parent=1 // pred_check_branch
      %418 = sbr.rel (0) target = $region13
    $region12: #{_lambda_.1} parent=1 // pred_region
      _
    $region13: #{_lambda_.1} parent=1 // pred_fallthru
      _
    // Predicated region
    $region14: #{_lambda_.1} parent=1 // pred_check
      _
    $region15: #{_lambda_.1} parent=1 // pred_check_branch
      %420 = sbr.rel (0) target = $region17
    $region16: #{_lambda_.1} parent=1 // pred_region
      _
    $region17: #{_lambda_.1} parent=1 // pred_fallthru
      _
    // Predicated region
    $region18: #{_lambda_.1} parent=1 // pred_check
      _
    $region19: #{_lambda_.1} parent=1 // pred_check_branch
      %422 = sbr.rel (0) target = $region21
    $region20: #{_lambda_.1} parent=1 // pred_region
      _
    $region21: #{_lambda_.1} parent=1 // pred_fallthru
      _
    // Predicated region
    $region22: #{_lambda_.1} parent=1 // pred_check
      _
    $region23: #{_lambda_.1} parent=1 // pred_check_branch
      %424 = sbr.rel (0) target = $region25
    $region24: #{_lambda_.1} parent=1 // pred_region
      _
    $region25: #{_lambda_.1} parent=1 // pred_fallthru
      _
    %425 = vsyncpa [#allocation3], 1

</llo_original>
